<compile_context>
chip_gen: v7x
topology: tpu7x:2x2x1
jax: 0.10.0
libtpu: 0.0.40
codegen_flags: <defaults>
</compile_context>

<pallas_src>
import math

import jax
import jax.numpy as jnp
from jax.experimental import pallas as pl
from jax.experimental.pallas import tpu as pltpu


def _round_down(v: int, m: int) -> int:
    return (v // m) * m


def _round_up(v: int, m: int) -> int:
    return ((v + m - 1) // m) * m


def _vmem_budget_bytes() -> int:
    """Generation-aware scoped-VMEM budget to request from Mosaic."""
    try:
        cap = pltpu.get_tpu_info().vmem_capacity_bytes  # 128 MiB v5e/v6e, 64 MiB v7x
    except Exception:
        cap = 64 << 20  # conservative (v7x per-TC) fallback
    # Leave headroom for Mosaic internal scratch; never ask for more than 96 MiB.
    return min((cap * 3) // 4, 96 << 20)


def _make_scale_kernel(scale: float):
    """Elementwise scale kernel with the multiplier baked in as an immediate."""
    # NOTE: must be a Python float — a jnp scalar here becomes a captured
    # constant and pallas_call refuses to trace the kernel.
    s = float(scale)

    def kernel(x_ref, o_ref):
        # Compute in f32 (exact, and v5e has no bf16 VALU), cast on store.
        o_ref[...] = (x_ref[...].astype(jnp.float32) * s).astype(o_ref.dtype)

    return kernel


def layerwise_lr_forward(x: jax.Array, lr_multiplier: float = 1.0,
                         *, max_tile_bytes: int | None = None) -> jax.Array:
    """Stand-in forward for LayerWiseLRModule: identity * lr_multiplier.

    `lr_multiplier` must be a host-side Python number (each distinct value
    compiles its own kernel; a traced multiplier is not supported).
    """
    # Default path (the only path the abstract reference ever exercises):
    # exact identity -> no kernel, no HBM traffic, no launch overhead.
    if lr_multiplier == 1.0:
        return x

    orig_shape = x.shape
    total = math.prod(orig_shape) if orig_shape else 1
    itemsize = jnp.dtype(x.dtype).itemsize

    # Fall back to plain XLA (fuses with neighbors, already HBM-bound) when a
    # Pallas launch would only add overhead or change semantics:
    #   * empty tensors,
    #   * ragged element counts (avoiding the pad+slice 3x-traffic path),
    #   * non-float dtypes (f32 multiply + truncate != integer semantics).
    if (total == 0 or total % 128 != 0
            or not jnp.issubdtype(x.dtype, jnp.floating)):
        return (x * lr_multiplier).astype(x.dtype)

    # Lane-dense last dim: the largest of {1024, 512, 256, 128} dividing the
    # element count.  Byte-based row tiling below keeps even the 128-lane case
    # in multi-MiB tiles, so the slab stays on the HBM roofline.
    lane = 128
    for cand in (1024, 512, 256):
        if total % cand == 0:
            lane = cand
            break
    rows = total // lane
    x2d = x.reshape(rows, lane)  # contiguous reshape: metadata only, no copy

    vmem_budget = _vmem_budget_bytes()
    if max_tile_bytes is None:
        # in + out, each double-buffered => ~4 live tiles; keep 2x headroom.
        max_tile_bytes = max(vmem_budget // 8, 8 * lane * itemsize)

    # Sublane pack factor: 8 for 4-byte, 16 for bf16, 32 for int8 dtypes.
    sub = max(8, 32 // itemsize)
    tm = max(sub, _round_down(max_tile_bytes // (lane * itemsize), sub))

    # v7x has 2 TensorCores sharing HBM: on multi-MiB arrays make sure the
    # "parallel" grid axis has at least 2 tiles so both cores get work
    # (no effect on single-TC v5e/v6e beyond slightly smaller — still MiB —
    # tiles).
    if rows * lane * itemsize >= (4 << 20) and rows >= 2 * sub:
        tm = min(tm, _round_up(pl.cdiv(rows, 2), sub))

    if tm >= rows:
        tm = rows  # single full-extent block (always a legal block shape)

    grid = (pl.cdiv(rows, tm),)

    out2d = pl.pallas_call(
        _make_scale_kernel(lr_multiplier),
        out_shape=jax.ShapeDtypeStruct((rows, lane), x2d.dtype),
        grid=grid,
        in_specs=[pl.BlockSpec((tm, lane), lambda i: (i, 0))],
        out_specs=pl.BlockSpec((tm, lane), lambda i: (i, 0)),
        compiler_params=pltpu.CompilerParams(
            dimension_semantics=("parallel",),
            vmem_limit_bytes=vmem_budget,
        ),
        cost_estimate=pl.CostEstimate(
            flops=total,
            transcendentals=0,
            bytes_accessed=2 * total * itemsize,
        ),
    )(x2d)

    return out2d.reshape(orig_shape)


class LayerWiseLRModuleJax:
    """JAX mirror of the PyTorch LayerWiseLRModule (no parameters)."""

    def __init__(self):
        self.lr_mult_dict = {}   # param-id -> lr multiplier (host-side bookkeeping)
        self.params = []         # abstract base class: no parameters registered

    def forward(self, x, lr_multiplier: float = 1.0):
        # Abstract in the reference; here: identity * lr_multiplier.
        # lr_multiplier == 1.0 (the default) short-circuits to a no-op.
        return layerwise_lr_forward(x, lr_multiplier=lr_multiplier)

    # Host-side optimizer bookkeeping (no tensor compute, plain Python).
    def optimizer_parameters(self):
        param_groups = []
        standard_lr_params = []
        for p in self.params:
            if id(p) in self.lr_mult_dict:
                param_groups.append({"params": [p]})
            else:
                standard_lr_params.append(p)
        param_groups.append({"params": standard_lr_params})
        return param_groups

    def get_lr_multiplier(self, param_group):
        if param_group["params"]:
            p = param_group["params"][0]
            return self.lr_mult_dict.get(id(p), 1.0)
        return 1.0


if __name__ == "__main__":
    key = jax.random.PRNGKey(0)
    k0, k1, k2 = jax.random.split(key, 3)

    module = LayerWiseLRModuleJax()

    # NCHW input, small shapes: batch=2, channels=4, spatial=16x16 (2048 elems).
    x = jax.random.normal(k0, (2, 4, 16, 16), dtype=jnp.float32)

    # Default path (only path the abstract reference ever exercises): identity.
    y_default = jax.block_until_ready(module.forward(x))
    assert y_default.shape == x.shape and y_default.dtype == x.dtype
    assert bool(jnp.array_equal(y_default, x))

    # Scale path: exercises the Pallas kernel (2048 elems -> one (2, 1024) tile).
    y_scaled = jax.block_until_ready(module.forward(x, lr_multiplier=0.5))
    assert y_scaled.shape == x.shape and y_scaled.dtype == x.dtype
    assert bool(jnp.array_equal(y_scaled, x * 0.5))

    # Multi-tile path: cap tile bytes so the parallel grid axis has >1 step.
    x_big = jax.random.normal(k1, (2, 64, 128), dtype=jnp.float32)  # 16384 elems
    y_big = jax.block_until_ready(
        layerwise_lr_forward(x_big, lr_multiplier=2.0,
                             max_tile_bytes=8 * 1024 * 4))  # tm=8 -> grid=(2,)
    assert bool(jnp.array_equal(y_big, x_big * 2.0))

    # Ragged element count (not a multiple of 128): XLA fallback, no pad/slice.
    x_ragged = jax.random.normal(k2, (3, 5, 7), dtype=jnp.float32)
    y_ragged = jax.block_until_ready(module.forward(x_ragged, lr_multiplier=0.25))
    assert bool(jnp.allclose(y_ragged, x_ragged * 0.25))

    print("KERNEL_OK")
</pallas_src>

<mosaic_0001>
module attributes {stable_mosaic.version = 11 : i64} {
  func.func @kernel(%arg0: i32, %arg1: memref<2x1024xf32, #tpu.memory_space<vmem>>, %arg2: memref<2x1024xf32, #tpu.memory_space<vmem>>) attributes {dimension_semantics = [#tpu.dimension_semantics<parallel>], iteration_bounds = array<i64: 1>, scalar_prefetch = 0 : i64, scratch_operands = 0 : i64, tpu.core_type = #tpu.core_type<tc>, window_params = [{transform_indices = @transform_0, window_bounds = array<i64: 2, 1024>}, {transform_indices = @transform_1, window_bounds = array<i64: 2, 1024>}]} {
    %c0 = arith.constant 0 : index
    %c0_0 = arith.constant 0 : index
    %0 = vector.load %arg1[%c0, %c0_0] : memref<2x1024xf32, #tpu.memory_space<vmem>>, vector<2x1024xf32>
    %cst = arith.constant 5.000000e-01 : f32
    %1 = vector.broadcast %cst : f32 to vector<2x1024xf32>
    %2 = arith.mulf %0, %1 : vector<2x1024xf32>
    %c0_1 = arith.constant 0 : index
    %c0_2 = arith.constant 0 : index
    %3 = vector.load %arg2[%c0_1, %c0_2] : memref<2x1024xf32, #tpu.memory_space<vmem>>, vector<2x1024xf32>
    tpu.vector_store %arg2[%c0_1, %c0_2], %2 {strides = array<i32>} : memref<2x1024xf32, #tpu.memory_space<vmem>>, vector<2x1024xf32>,
    return
  }
  func.func @transform_0(%arg0: i32) -> (i32, i32) {
    %c0_i32 = arith.constant 0 : i32
    %c0_i32_0 = arith.constant 0 : i32
    return %arg0, %c0_i32 : i32, i32
  }
  func.func @transform_1(%arg0: i32) -> (i32, i32) {
    %c0_i32 = arith.constant 0 : i32
    %c0_i32_0 = arith.constant 0 : i32
    return %arg0, %c0_i32 : i32, i32
  }
}

</mosaic_0001>

<llo_original>
// kernel: tpu_custom_call.1
$region0: #{tpu_custom_call.1}
  #allocation0 [shape = 'u32[]', space=smem, size = 0x4, offset = 0x4, fixed_abs, tag = 'smem constant byte address 0x4 - core index']
  #allocation1 [shape = 'u32[144,128]{1,0:T(1,128)}', space=vmem, size = 0x12000, scoped, tag = 'internal scratch']
  %s0 = inlined_call_operand.hbm [shape: f32[2,1024], index: 0, kind: input, shape index: {}]
  %s1 = inlined_call_operand.hbm [shape: f32[2,1024], index: 1, kind: output, shape index: {}]
  %s2 = sld [smem:[#allocation0]]
  $region18: #{tpu_custom_call.1} parent=0
    _
  %s4 = ssub.s32 1, %s2
  %s5 = scalar_select 0, %s4, %s2
  $region1: #{tpu_custom_call.1} parent=0
    #allocation2 [shape = 'u8[8192]{0}', space=vmem, size = 0x2000, scoped, tag = 'input window, operand 0, single buffered']
    #allocation3 [shape = 's32[1]{0}', space=sflag, size = 0x4, scoped, tag = 'scoped memory for tpu_custom_call.1']
    #allocation4 [shape = 's32[1]{0}', space=sflag, size = 0x4, scoped, tag = 'scoped memory for tpu_custom_call.1']
    #allocation5 [shape = 'u8[8192]{0}', space=vmem, size = 0x2000, scoped, tag = 'output window, operand 0, single buffered']
    %6 = vsyncpa [#allocation3], 0
    %7 = vsyncpa [#allocation4], 0
    // Predicated region
    $region2: #{tpu_custom_call.1} parent=1 // pred_check
      _
    $region3: #{tpu_custom_call.1} parent=1 // pred_check_branch
      %9 = sbr.rel (0) target = $region5
    $region4: #{tpu_custom_call.1} parent=1 // pred_region
      %s11 = ssub.s32 256, 256
      %12 = vsyncadd [#allocation3], %s11
      %s14 = sshll.u32 [#allocation2], 4
      %s15 = int_to_ptr.vmem [resolvable:$true] %s14
      %17 = dma.hbm_to_vmem [thread:$0]  %s0, 256, %s15, [#allocation3]
    $region5: #{tpu_custom_call.1} parent=1 // pred_fallthru
      _
    // Predicated region
    $region6: #{tpu_custom_call.1} parent=1 // pred_check
      _
    $region7: #{tpu_custom_call.1} parent=1 // pred_check_branch
      %19 = sbr.rel (0) target = $region9
    $region8: #{tpu_custom_call.1} parent=1 // pred_region
      %20 = dma.done [#allocation3], 256
    $region9: #{tpu_custom_call.1} parent=1 // pred_fallthru
      _
    %v21 = vld [vmem:[#allocation2] sm:$0xff]
    %v22 = vld [vmem:[#allocation2 + $0x8] sm:$0xff]
    %v23 = vmul.f32 %v21, 0.5
    %v24 = vmul.f32 %v22, 0.5
    %25 = vst [vmem:[#allocation5] sm:$0xff] %v23
    %26 = vst [vmem:[#allocation5 + $0x8] sm:$0xff] %v24
    // Predicated region
    $region10: #{tpu_custom_call.1} parent=1 // pred_check
      _
    $region11: #{tpu_custom_call.1} parent=1 // pred_check_branch
      %28 = sbr.rel (0) target = $region13
    $region12: #{tpu_custom_call.1} parent=1 // pred_region
      %s30 = ssub.s32 256, 256
      %31 = vsyncadd [#allocation4], %s30
      %s33 = sshll.u32 [#allocation5], 4
      %s34 = int_to_ptr.vmem [resolvable:$true] %s33
      %36 = dma.vmem_to_hbm [thread:$0]  %s34, 256, %s1, [#allocation4]
    $region13: #{tpu_custom_call.1} parent=1 // pred_fallthru
      _
    // Predicated region
    $region14: #{tpu_custom_call.1} parent=1 // pred_check
      _
    $region15: #{tpu_custom_call.1} parent=1 // pred_check_branch
      %38 = sbr.rel (0) target = $region17
    $region16: #{tpu_custom_call.1} parent=1 // pred_region
      %39 = dma.done [#allocation4], 256
    $region17: #{tpu_custom_call.1} parent=1 // pred_fallthru
      _
    %40 = vsyncpa [#allocation3], 1
    %41 = vsyncpa [#allocation4], 1

</llo_original>
